<compile_context>
chip_gen: v7x
topology: tpu7x:2x2x1
jax: 0.10.0
libtpu: 0.0.40
codegen_flags: <defaults>
</compile_context>

<pallas_src>
import functools

import jax
import jax.numpy as jnp
from jax import lax
from jax.experimental import pallas as pl
from jax.experimental.pallas import tpu as pltpu


def gat_kernel(h_ref, w_ref, a_ref, adj_ref, out_ref, *, alpha, concat,
               n_heads, f_out):
    # ---- shared projection: all heads in one wide bf16 MXU matmul ----------
    wh = jnp.dot(h_ref[...], w_ref[...],
                 preferred_element_type=jnp.float32)            # (N, H*F_out) f32
    wh_b = wh.astype(jnp.bfloat16)                              # cast once, slice per head

    a_src_blk = a_ref[0:n_heads, :]                             # (H, H*F_out) block-diag
    a_dst_blk = a_ref[n_heads:, :]                              # (H, H*F_out) block-diag

    # Source-node logits for all heads at once: columns (N, H).
    e_src_all = lax.dot_general(wh, a_src_blk, (((1,), (1,)), ((), ())),
                                preferred_element_type=jnp.float32)   # (N, H)
    # Target-node logits for all heads at once: lane-oriented rows (H, N).
    e_dst_all = lax.dot_general(a_dst_blk, wh, (((1,), (1,)), ((), ())),
                                preferred_element_type=jnp.float32)   # (H, N)

    # Additive adjacency mask built in-kernel from the int8 adjacency:
    # one compare+select for the whole tile, shared by every head.
    adj_f = adj_ref[...].astype(jnp.float32)                    # (N, N)
    bias = jnp.where(adj_f > 0.0, 0.0, -9.0e15)                 # (N, N) f32

    # ---- per-head attention + aggregation (H is small; static unroll) ------
    outs = []
    for t in range(n_heads):
        sl = slice(t * f_out, (t + 1) * f_out)

        e = e_src_all[:, t:t + 1] + e_dst_all[t:t + 1, :]       # (N, N)
        e = jnp.maximum(e, alpha * e)                           # LeakyReLU (0<=alpha<1)
        att = e + bias                                          # adjacency mask

        # Row softmax (dim=1); denominator reciprocal on the EUP.
        att = att - jnp.max(att, axis=1, keepdims=True)
        att = jnp.exp(att)
        att = att * pl.reciprocal(jnp.sum(att, axis=1, keepdims=True),
                                  approx=True)

        # h'_t = attention @ Wh_t  (bf16 MXU operands, f32 accumulation)
        outs.append(jnp.dot(att.astype(jnp.bfloat16), wh_b[:, sl],
                            preferred_element_type=jnp.float32))  # (N, F_out)

    out = jnp.concatenate(outs, axis=-1)                        # (N, H*F_out) f32
    if concat:
        # ELU(x) = x if x > 0 else exp(x) - 1
        out = jnp.where(out > 0, out, jnp.exp(out) - 1.0)
    out_ref[...] = out.astype(out_ref.dtype)                    # single lane-dense store


def gat_forward(h, adj, W_heads, a_heads, *, alpha=0.2, concat=True):
    """Fused multi-head GAT forward.

    Each head t computes exactly GraphAttentionLayer_origin.forward(h, adj)
    with its own (W_heads[t], a_heads[t]); head outputs are concatenated
    along the feature axis.

    h: (N, F_in)    adj: (N, N)
    W_heads: (H, F_in, F_out)    a_heads: (H, 2*F_out, 1)
    returns: (N, H*F_out) float32
    """
    N, f_in = h.shape
    n_heads, _, f_out = W_heads.shape
    hf = n_heads * f_out

    # Heads stacked along output columns -> one wide matmul, lane-dense output.
    w_wide = jnp.transpose(W_heads, (1, 0, 2)).reshape(f_in, hf).astype(jnp.bfloat16)
    h_bf16 = h.astype(jnp.bfloat16)

    # Block-diagonal attention vectors: rows 0..H-1 are the source halves,
    # rows H..2H-1 are the target halves (both feed one small contraction each).
    a_src = a_heads[:, :f_out, 0]                               # (H, F_out)
    a_dst = a_heads[:, f_out:, 0]                               # (H, F_out)
    eye = jnp.eye(n_heads, dtype=jnp.float32)[:, :, None]       # (H, H, 1)
    a_src_blk = (eye * a_src[None, :, :]).reshape(n_heads, hf)
    a_dst_blk = (eye * a_dst[None, :, :]).reshape(n_heads, hf)
    a_params = jnp.concatenate([a_src_blk, a_dst_blk], axis=0).astype(jnp.float32)

    # Compact int8 adjacency; the -9e15 additive bias is built in-kernel.
    adj_i8 = (adj > 0).astype(jnp.int8)

    kernel = functools.partial(gat_kernel, alpha=alpha, concat=concat,
                               n_heads=n_heads, f_out=f_out)

    # N=8 fits entirely in VMEM, so a single grid step does the whole layer.
    # TODO(synk): for real graph sizes, restructure into a (q_tile, kv_tile)
    # streaming grid with online softmax (precompute Wh / e_src_all / e_dst_all
    # once, stream >=512-row kv blocks of Wh + int8 mask via BlockSpec
    # pipelining, mark the q-tile axis "parallel" for v7x's 2 TensorCores, and
    # re-derive tile residency for v7x's 64 MiB VMEM).
    return pl.pallas_call(
        kernel,
        out_shape=jax.ShapeDtypeStruct((N, hf), jnp.float32),
        grid_spec=pl.GridSpec(
            grid=(1,),
            in_specs=[
                pl.BlockSpec((N, f_in), lambda i: (0, 0)),
                pl.BlockSpec((f_in, hf), lambda i: (0, 0)),
                pl.BlockSpec((2 * n_heads, hf), lambda i: (0, 0)),
                pl.BlockSpec((N, N), lambda i: (0, 0)),
            ],
            out_specs=pl.BlockSpec((N, hf), lambda i: (0, 0)),
        ),
        compiler_params=pltpu.CompilerParams(
            dimension_semantics=("arbitrary",)),
    )(h_bf16, w_wide, a_params, adj_i8)


def gat_reference(h, adj, W, a, *, alpha=0.2, concat=True):
    """Plain-JAX single-head reference mirroring the PyTorch forward."""
    f_out = W.shape[1]
    wh = h @ W
    e = wh @ a[:f_out, :] + (wh @ a[f_out:, :]).T
    e = jnp.where(e > 0, e, alpha * e)
    att = jnp.where(adj > 0, e, jnp.full_like(e, -9.0e15))
    att = jax.nn.softmax(att, axis=1)
    h_prime = att @ wh
    return jax.nn.elu(h_prime) if concat else h_prime


def xavier_uniform(key, shape, gain):
    fan_in, fan_out = shape[0], shape[1]
    bound = gain * jnp.sqrt(6.0 / (fan_in + fan_out))
    return jax.random.uniform(key, shape, jnp.float32, -bound, bound)


if __name__ == "__main__":
    # Small shapes: N=8 nodes, 16 -> 32 features, 4 fused heads
    # (H*F_out = 128 makes the kernel output exactly one lane-dense vreg row).
    N, F_IN, F_OUT, HEADS = 8, 16, 32, 4
    ALPHA = 0.2           # LeakyReLU negative slope
    GAIN = 1.414

    key = jax.random.PRNGKey(0)
    k_h, k_adj, k_w, k_a = jax.random.split(key, 4)

    h = jax.random.normal(k_h, (N, F_IN), jnp.float32)
    adj = (jax.random.uniform(k_adj, (N, N)) > 0.5).astype(jnp.float32)
    adj = jnp.maximum(adj, jnp.eye(N, dtype=jnp.float32))     # self loops

    w_keys = jax.random.split(k_w, HEADS)
    a_keys = jax.random.split(k_a, HEADS)
    W_heads = jnp.stack([xavier_uniform(w_keys[t], (F_IN, F_OUT), GAIN)
                         for t in range(HEADS)])              # (H, F_in, F_out)
    a_heads = jnp.stack([xavier_uniform(a_keys[t], (2 * F_OUT, 1), GAIN)
                         for t in range(HEADS)])              # (H, 2*F_out, 1)
    # TODO(synk): self.dropout is stored in __init__ but never applied in this
    # forward(), so no dropout is implemented here.

    out = gat_forward(h, adj, W_heads, a_heads, alpha=ALPHA, concat=True)
    out = jax.block_until_ready(out)
    assert out.shape == (N, HEADS * F_OUT)

    # Per-head check against the plain-f32 reference. Tolerance accounts for
    # bf16 MXU operands and the approx (EUP) reciprocal used in the kernel.
    for t in range(HEADS):
        ref_t = gat_reference(h, adj, W_heads[t], a_heads[t],
                              alpha=ALPHA, concat=True)
        got_t = out[:, t * F_OUT:(t + 1) * F_OUT]
        err = jnp.max(jnp.abs(got_t - ref_t))
        assert jnp.allclose(got_t, ref_t, atol=5e-2, rtol=5e-2), \
            f"head {t} mismatch (max abs err {err})"

    print("KERNEL_OK")
</pallas_src>

<mosaic_0001>
module attributes {stable_mosaic.version = 11 : i64} {
  func.func @gat_kernel(%arg0: i32, %arg1: memref<8x16xbf16, #tpu.memory_space<vmem>>, %arg2: memref<16x128xbf16, #tpu.memory_space<vmem>>, %arg3: memref<8x128xf32, #tpu.memory_space<vmem>>, %arg4: memref<8x8xi8, #tpu.memory_space<vmem>>, %arg5: memref<8x128xf32, #tpu.memory_space<vmem>>) attributes {dimension_semantics = [#tpu.dimension_semantics<arbitrary>], iteration_bounds = array<i64: 1>, scalar_prefetch = 0 : i64, scratch_operands = 0 : i64, tpu.core_type = #tpu.core_type<tc>, window_params = [{pipeline_mode = #tpu.pipeline_mode<synchronous>, transform_indices = @transform_0, window_bounds = array<i64: 8, 16>}, {pipeline_mode = #tpu.pipeline_mode<synchronous>, transform_indices = @transform_1, window_bounds = array<i64: 16, 128>}, {pipeline_mode = #tpu.pipeline_mode<synchronous>, transform_indices = @transform_2, window_bounds = array<i64: 8, 128>}, {pipeline_mode = #tpu.pipeline_mode<synchronous>, transform_indices = @transform_3, window_bounds = array<i64: 8, 8>}, {pipeline_mode = #tpu.pipeline_mode<synchronous>, transform_indices = @transform_4, window_bounds = array<i64: 8, 128>}]} {
    %c0 = arith.constant 0 : index
    %c0_0 = arith.constant 0 : index
    %0 = vector.load %arg1[%c0, %c0_0] : memref<8x16xbf16, #tpu.memory_space<vmem>>, vector<8x16xbf16>
    %c0_1 = arith.constant 0 : index
    %c0_2 = arith.constant 0 : index
    %1 = vector.load %arg2[%c0_1, %c0_2] : memref<16x128xbf16, #tpu.memory_space<vmem>>, vector<16x128xbf16>
    %cst = arith.constant dense<0.000000e+00> : vector<8x128xf32>
    %2 = tpu.matmul %0, %1, %cst {dimension_numbers = #tpu.dot_dimension_numbers<[1], [0], [0], [1], [0, 0, 1, 1], [], []>} : vector<8x16xbf16>, vector<16x128xbf16>, vector<8x128xf32> -> vector<8x128xf32>
    %3 = arith.truncf %2 : vector<8x128xf32> to vector<8x128xbf16>
    %c0_3 = arith.constant 0 : index
    %c0_4 = arith.constant 0 : index
    %4 = vector.load %arg3[%c0_3, %c0_4] : memref<8x128xf32, #tpu.memory_space<vmem>>, vector<4x128xf32>
    %c4 = arith.constant 4 : index
    %c0_5 = arith.constant 0 : index
    %5 = vector.load %arg3[%c4, %c0_5] : memref<8x128xf32, #tpu.memory_space<vmem>>, vector<4x128xf32>
    %cst_6 = arith.constant dense<0.000000e+00> : vector<8x4xf32>
    %6 = tpu.matmul %2, %4, %cst_6 {dimension_numbers = #tpu.dot_dimension_numbers<[1], [1], [0], [0], [0, 0, 1, 0], [], []>} : vector<8x128xf32>, vector<4x128xf32>, vector<8x4xf32> -> vector<8x4xf32>
    %cst_7 = arith.constant dense<0.000000e+00> : vector<4x8xf32>
    %7 = tpu.matmul %5, %2, %cst_7 {dimension_numbers = #tpu.dot_dimension_numbers<[1], [1], [0], [0], [0, 0, 1, 0], [], []>} : vector<4x128xf32>, vector<8x128xf32>, vector<4x8xf32> -> vector<4x8xf32>
    %c0_8 = arith.constant 0 : index
    %c0_9 = arith.constant 0 : index
    %8 = vector.load %arg4[%c0_8, %c0_9] : memref<8x8xi8, #tpu.memory_space<vmem>>, vector<8x8xi8>
    %9 = arith.sitofp %8 : vector<8x8xi8> to vector<8x8xf32>
    %cst_10 = arith.constant 0.000000e+00 : f32
    %10 = vector.broadcast %cst_10 : f32 to vector<8x8xf32>
    %11 = arith.cmpf ogt, %9, %10 : vector<8x8xf32>
    %cst_11 = arith.constant 0.000000e+00 : f32
    %cst_12 = arith.constant -9.000000e+15 : f32
    %12 = vector.broadcast %cst_11 : f32 to vector<8x8xf32>
    %13 = vector.broadcast %cst_12 : f32 to vector<8x8xf32>
    %14 = arith.select %11, %12, %13 : vector<8x8xi1>, vector<8x8xf32>
    %15 = vector.extract_strided_slice %6 {offsets = [0, 0], sizes = [8, 1], strides = [1, 1]} : vector<8x4xf32> to vector<8x1xf32>
    %16 = vector.extract_strided_slice %7 {offsets = [0, 0], sizes = [1, 8], strides = [1, 1]} : vector<4x8xf32> to vector<1x8xf32>
    %17 = vector.broadcast %15 : vector<8x1xf32> to vector<8x8xf32>
    %18 = vector.broadcast %16 : vector<1x8xf32> to vector<8x8xf32>
    %19 = arith.addf %17, %18 : vector<8x8xf32>
    %cst_13 = arith.constant 2.000000e-01 : f32
    %20 = vector.broadcast %cst_13 : f32 to vector<8x8xf32>
    %21 = arith.mulf %20, %19 : vector<8x8xf32>
    %22 = arith.maximumf %19, %21 : vector<8x8xf32>
    %23 = arith.addf %22, %14 : vector<8x8xf32>
    %cst_14 = arith.constant dense<0xFF800000> : vector<8xf32>
    %24 = vector.multi_reduction <maximumf>, %23, %cst_14 [1] : vector<8x8xf32> to vector<8xf32>
    %25 = vector.shape_cast %24 : vector<8xf32> to vector<8x1xf32>
    %26 = vector.broadcast %25 : vector<8x1xf32> to vector<8x8xf32>
    %27 = arith.subf %23, %26 : vector<8x8xf32>
    %28 = math.exp %27 : vector<8x8xf32>
    %cst_15 = arith.constant dense<0.000000e+00> : vector<8xf32>
    %29 = vector.multi_reduction <add>, %28, %cst_15 [1] : vector<8x8xf32> to vector<8xf32>
    %30 = vector.shape_cast %29 : vector<8xf32> to vector<8x1xf32>
    %31 = tpu.reciprocal %30 {approx = true} : vector<8x1xf32> -> vector<8x1xf32>
    %32 = vector.broadcast %31 : vector<8x1xf32> to vector<8x8xf32>
    %33 = arith.mulf %28, %32 : vector<8x8xf32>
    %34 = arith.truncf %33 : vector<8x8xf32> to vector<8x8xbf16>
    %35 = vector.extract_strided_slice %3 {offsets = [0, 0], sizes = [8, 32], strides = [1, 1]} : vector<8x128xbf16> to vector<8x32xbf16>
    %cst_16 = arith.constant dense<0.000000e+00> : vector<8x32xf32>
    %36 = tpu.matmul %34, %35, %cst_16 {dimension_numbers = #tpu.dot_dimension_numbers<[1], [0], [0], [1], [0, 0, 1, 1], [], []>} : vector<8x8xbf16>, vector<8x32xbf16>, vector<8x32xf32> -> vector<8x32xf32>
    %37 = vector.extract_strided_slice %6 {offsets = [0, 1], sizes = [8, 1], strides = [1, 1]} : vector<8x4xf32> to vector<8x1xf32>
    %38 = vector.extract_strided_slice %7 {offsets = [1, 0], sizes = [1, 8], strides = [1, 1]} : vector<4x8xf32> to vector<1x8xf32>
    %39 = vector.broadcast %37 : vector<8x1xf32> to vector<8x8xf32>
    %40 = vector.broadcast %38 : vector<1x8xf32> to vector<8x8xf32>
    %41 = arith.addf %39, %40 : vector<8x8xf32>
    %cst_17 = arith.constant 2.000000e-01 : f32
    %42 = vector.broadcast %cst_17 : f32 to vector<8x8xf32>
    %43 = arith.mulf %42, %41 : vector<8x8xf32>
    %44 = arith.maximumf %41, %43 : vector<8x8xf32>
    %45 = arith.addf %44, %14 : vector<8x8xf32>
    %cst_18 = arith.constant dense<0xFF800000> : vector<8xf32>
    %46 = vector.multi_reduction <maximumf>, %45, %cst_18 [1] : vector<8x8xf32> to vector<8xf32>
    %47 = vector.shape_cast %46 : vector<8xf32> to vector<8x1xf32>
    %48 = vector.broadcast %47 : vector<8x1xf32> to vector<8x8xf32>
    %49 = arith.subf %45, %48 : vector<8x8xf32>
    %50 = math.exp %49 : vector<8x8xf32>
    %cst_19 = arith.constant dense<0.000000e+00> : vector<8xf32>
    %51 = vector.multi_reduction <add>, %50, %cst_19 [1] : vector<8x8xf32> to vector<8xf32>
    %52 = vector.shape_cast %51 : vector<8xf32> to vector<8x1xf32>
    %53 = tpu.reciprocal %52 {approx = true} : vector<8x1xf32> -> vector<8x1xf32>
    %54 = vector.broadcast %53 : vector<8x1xf32> to vector<8x8xf32>
    %55 = arith.mulf %50, %54 : vector<8x8xf32>
    %56 = arith.truncf %55 : vector<8x8xf32> to vector<8x8xbf16>
    %57 = vector.extract_strided_slice %3 {offsets = [0, 32], sizes = [8, 32], strides = [1, 1]} : vector<8x128xbf16> to vector<8x32xbf16>
    %cst_20 = arith.constant dense<0.000000e+00> : vector<8x32xf32>
    %58 = tpu.matmul %56, %57, %cst_20 {dimension_numbers = #tpu.dot_dimension_numbers<[1], [0], [0], [1], [0, 0, 1, 1], [], []>} : vector<8x8xbf16>, vector<8x32xbf16>, vector<8x32xf32> -> vector<8x32xf32>
    %59 = vector.extract_strided_slice %6 {offsets = [0, 2], sizes = [8, 1], strides = [1, 1]} : vector<8x4xf32> to vector<8x1xf32>
    %60 = vector.extract_strided_slice %7 {offsets = [2, 0], sizes = [1, 8], strides = [1, 1]} : vector<4x8xf32> to vector<1x8xf32>
    %61 = vector.broadcast %59 : vector<8x1xf32> to vector<8x8xf32>
    %62 = vector.broadcast %60 : vector<1x8xf32> to vector<8x8xf32>
    %63 = arith.addf %61, %62 : vector<8x8xf32>
    %cst_21 = arith.constant 2.000000e-01 : f32
    %64 = vector.broadcast %cst_21 : f32 to vector<8x8xf32>
    %65 = arith.mulf %64, %63 : vector<8x8xf32>
    %66 = arith.maximumf %63, %65 : vector<8x8xf32>
    %67 = arith.addf %66, %14 : vector<8x8xf32>
    %cst_22 = arith.constant dense<0xFF800000> : vector<8xf32>
    %68 = vector.multi_reduction <maximumf>, %67, %cst_22 [1] : vector<8x8xf32> to vector<8xf32>
    %69 = vector.shape_cast %68 : vector<8xf32> to vector<8x1xf32>
    %70 = vector.broadcast %69 : vector<8x1xf32> to vector<8x8xf32>
    %71 = arith.subf %67, %70 : vector<8x8xf32>
    %72 = math.exp %71 : vector<8x8xf32>
    %cst_23 = arith.constant dense<0.000000e+00> : vector<8xf32>
    %73 = vector.multi_reduction <add>, %72, %cst_23 [1] : vector<8x8xf32> to vector<8xf32>
    %74 = vector.shape_cast %73 : vector<8xf32> to vector<8x1xf32>
    %75 = tpu.reciprocal %74 {approx = true} : vector<8x1xf32> -> vector<8x1xf32>
    %76 = vector.broadcast %75 : vector<8x1xf32> to vector<8x8xf32>
    %77 = arith.mulf %72, %76 : vector<8x8xf32>
    %78 = arith.truncf %77 : vector<8x8xf32> to vector<8x8xbf16>
    %79 = vector.extract_strided_slice %3 {offsets = [0, 64], sizes = [8, 32], strides = [1, 1]} : vector<8x128xbf16> to vector<8x32xbf16>
    %cst_24 = arith.constant dense<0.000000e+00> : vector<8x32xf32>
    %80 = tpu.matmul %78, %79, %cst_24 {dimension_numbers = #tpu.dot_dimension_numbers<[1], [0], [0], [1], [0, 0, 1, 1], [], []>} : vector<8x8xbf16>, vector<8x32xbf16>, vector<8x32xf32> -> vector<8x32xf32>
    %81 = vector.extract_strided_slice %6 {offsets = [0, 3], sizes = [8, 1], strides = [1, 1]} : vector<8x4xf32> to vector<8x1xf32>
    %82 = vector.extract_strided_slice %7 {offsets = [3, 0], sizes = [1, 8], strides = [1, 1]} : vector<4x8xf32> to vector<1x8xf32>
    %83 = vector.broadcast %81 : vector<8x1xf32> to vector<8x8xf32>
    %84 = vector.broadcast %82 : vector<1x8xf32> to vector<8x8xf32>
    %85 = arith.addf %83, %84 : vector<8x8xf32>
    %cst_25 = arith.constant 2.000000e-01 : f32
    %86 = vector.broadcast %cst_25 : f32 to vector<8x8xf32>
    %87 = arith.mulf %86, %85 : vector<8x8xf32>
    %88 = arith.maximumf %85, %87 : vector<8x8xf32>
    %89 = arith.addf %88, %14 : vector<8x8xf32>
    %cst_26 = arith.constant dense<0xFF800000> : vector<8xf32>
    %90 = vector.multi_reduction <maximumf>, %89, %cst_26 [1] : vector<8x8xf32> to vector<8xf32>
    %91 = vector.shape_cast %90 : vector<8xf32> to vector<8x1xf32>
    %92 = vector.broadcast %91 : vector<8x1xf32> to vector<8x8xf32>
    %93 = arith.subf %89, %92 : vector<8x8xf32>
    %94 = math.exp %93 : vector<8x8xf32>
    %cst_27 = arith.constant dense<0.000000e+00> : vector<8xf32>
    %95 = vector.multi_reduction <add>, %94, %cst_27 [1] : vector<8x8xf32> to vector<8xf32>
    %96 = vector.shape_cast %95 : vector<8xf32> to vector<8x1xf32>
    %97 = tpu.reciprocal %96 {approx = true} : vector<8x1xf32> -> vector<8x1xf32>
    %98 = vector.broadcast %97 : vector<8x1xf32> to vector<8x8xf32>
    %99 = arith.mulf %94, %98 : vector<8x8xf32>
    %100 = arith.truncf %99 : vector<8x8xf32> to vector<8x8xbf16>
    %101 = vector.extract_strided_slice %3 {offsets = [0, 96], sizes = [8, 32], strides = [1, 1]} : vector<8x128xbf16> to vector<8x32xbf16>
    %cst_28 = arith.constant dense<0.000000e+00> : vector<8x32xf32>
    %102 = tpu.matmul %100, %101, %cst_28 {dimension_numbers = #tpu.dot_dimension_numbers<[1], [0], [0], [1], [0, 0, 1, 1], [], []>} : vector<8x8xbf16>, vector<8x32xbf16>, vector<8x32xf32> -> vector<8x32xf32>
    %103 = tpu.concatenate %36, %58, %80, %102 in 1 : vector<8x32xf32>, vector<8x32xf32>, vector<8x32xf32>, vector<8x32xf32> -> vector<8x128xf32>
    %cst_29 = arith.constant 0.000000e+00 : f32
    %104 = vector.broadcast %cst_29 : f32 to vector<8x128xf32>
    %105 = arith.cmpf ogt, %103, %104 : vector<8x128xf32>
    %106 = math.exp %103 : vector<8x128xf32>
    %cst_30 = arith.constant 1.000000e+00 : f32
    %107 = vector.broadcast %cst_30 : f32 to vector<8x128xf32>
    %108 = arith.subf %106, %107 : vector<8x128xf32>
    %109 = arith.select %105, %103, %108 : vector<8x128xi1>, vector<8x128xf32>
    %c0_31 = arith.constant 0 : index
    %c0_32 = arith.constant 0 : index
    %110 = vector.load %arg5[%c0_31, %c0_32] : memref<8x128xf32, #tpu.memory_space<vmem>>, vector<8x128xf32>
    tpu.vector_store %arg5[%c0_31, %c0_32], %109 {strides = array<i32>} : memref<8x128xf32, #tpu.memory_space<vmem>>, vector<8x128xf32>,
    return
  }
  func.func @transform_0(%arg0: i32) -> (i32, i32) {
    %c0_i32 = arith.constant 0 : i32
    %c0_i32_0 = arith.constant 0 : i32
    %c0_i32_1 = arith.constant 0 : i32
    return %c0_i32, %c0_i32_0 : i32, i32
  }
  func.func @transform_1(%arg0: i32) -> (i32, i32) {
    %c0_i32 = arith.constant 0 : i32
    %c0_i32_0 = arith.constant 0 : i32
    %c0_i32_1 = arith.constant 0 : i32
    return %c0_i32, %c0_i32_0 : i32, i32
  }
  func.func @transform_2(%arg0: i32) -> (i32, i32) {
    %c0_i32 = arith.constant 0 : i32
    %c0_i32_0 = arith.constant 0 : i32
    %c0_i32_1 = arith.constant 0 : i32
    return %c0_i32, %c0_i32_0 : i32, i32
  }
  func.func @transform_3(%arg0: i32) -> (i32, i32) {
    %c0_i32 = arith.constant 0 : i32
    %c0_i32_0 = arith.constant 0 : i32
    %c0_i32_1 = arith.constant 0 : i32
    return %c0_i32, %c0_i32_0 : i32, i32
  }
  func.func @transform_4(%arg0: i32) -> (i32, i32) {
    %c0_i32 = arith.constant 0 : i32
    %c0_i32_0 = arith.constant 0 : i32
    %c0_i32_1 = arith.constant 0 : i32
    return %c0_i32, %c0_i32_0 : i32, i32
  }
}

</mosaic_0001>

<llo_original>
// kernel: tpu_custom_call.1
$region0: #{tpu_custom_call.1}
  #allocation0 [shape = 'u32[]', space=smem, size = 0x4, offset = 0x4, fixed_abs, tag = 'smem constant byte address 0x4 - core index']
  #allocation1 [shape = 'u32[144,128]{1,0:T(1,128)}', space=vmem, size = 0x12000, scoped, tag = 'internal scratch']
  %s0 = inlined_call_operand.hbm [shape: bf16[8,16], index: 0, kind: input, shape index: {}]
  %s1 = inlined_call_operand.hbm [shape: bf16[16,128], index: 1, kind: input, shape index: {}]
  %s2 = inlined_call_operand.hbm [shape: f32[8,128], index: 2, kind: input, shape index: {}]
  %s3 = inlined_call_operand.vmem [shape: s8[8,8], index: 3, kind: input, shape index: {}]
  %s4 = inlined_call_operand.hbm [shape: f32[8,128], index: 4, kind: output, shape index: {}]
  %s5 = sld [smem:[#allocation0]]
  $region38: #{tpu_custom_call.1} parent=0
    _
  %s7 = ssub.s32 1, %s5
  %s8 = scalar_select 0, %s7, %s5
  $region1: #{tpu_custom_call.1} parent=0
    #allocation2 [shape = 'u8[2048]{0}', space=vmem, size = 0x800, scoped, tag = 'input window, operand 0, single buffered']
    #allocation3 [shape = 's32[1]{0}', space=sflag, size = 0x4, scoped, tag = 'scoped memory for tpu_custom_call.1']
    #allocation4 [shape = 's32[1]{0}', space=sflag, size = 0x4, scoped, tag = 'scoped memory for tpu_custom_call.1']
    #allocation5 [shape = 'u8[4096]{0}', space=vmem, size = 0x1000, scoped, tag = 'input window, operand 1, single buffered']
    #allocation6 [shape = 's32[1]{0}', space=sflag, size = 0x4, scoped, tag = 'scoped memory for tpu_custom_call.1']
    #allocation7 [shape = 'u8[4096]{0}', space=vmem, size = 0x1000, scoped, tag = 'input window, operand 2, single buffered']
    #allocation8 [shape = 'u8[4096]{0}', space=vmem, size = 0x1000, scoped, tag = 'output window, operand 0, single buffered']
    %9 = vsyncpa [#allocation3], 0
    %10 = vsyncpa [#allocation6], 0
    %11 = vsyncpa [#allocation4], 0
    // Predicated region
    $region2: #{tpu_custom_call.1} parent=1 // pred_check
      _
    $region3: #{tpu_custom_call.1} parent=1 // pred_check_branch
      %13 = sbr.rel (0) target = $region5
    $region4: #{tpu_custom_call.1} parent=1 // pred_region
      %s15 = ssub.s32 64, 64
      %16 = vsyncadd [#allocation3], %s15
      %s18 = sshll.u32 [#allocation2], 4
      %s19 = int_to_ptr.vmem [resolvable:$true] %s18
      %21 = dma.hbm_to_vmem [thread:$0]  %s0, 64, %s19, [#allocation3]
    $region5: #{tpu_custom_call.1} parent=1 // pred_fallthru
      _
    // Predicated region
    $region6: #{tpu_custom_call.1} parent=1 // pred_check
      _
    $region7: #{tpu_custom_call.1} parent=1 // pred_check_branch
      %23 = sbr.rel (0) target = $region9
    $region8: #{tpu_custom_call.1} parent=1 // pred_region
      %s25 = ssub.s32 128, 128
      %26 = vsyncadd [#allocation6], %s25
      %s27 = sshll.u32 [#allocation5], 4
      %s28 = int_to_ptr.vmem [resolvable:$true] %s27
      %33 = dma.hbm_to_vmem [thread:$0]  %s1, 128, %s28, [#allocation6], 64, 64, 4
    $region9: #{tpu_custom_call.1} parent=1 // pred_fallthru
      _
    // Predicated region
    $region10: #{tpu_custom_call.1} parent=1 // pred_check
      _
    $region11: #{tpu_custom_call.1} parent=1 // pred_check_branch
      %35 = sbr.rel (0) target = $region13
    $region12: #{tpu_custom_call.1} parent=1 // pred_region
      %s37 = ssub.s32 128, 128
      %38 = vsyncadd [#allocation6], %s37
      %s40 = sshll.u32 [#allocation7], 4
      %s41 = int_to_ptr.vmem [resolvable:$true] %s40
      %43 = dma.hbm_to_vmem [thread:$0]  %s2, 128, %s41, [#allocation6]
    $region13: #{tpu_custom_call.1} parent=1 // pred_fallthru
      _
    // Predicated region
    $region14: #{tpu_custom_call.1} parent=1 // pred_check
      _
    $region15: #{tpu_custom_call.1} parent=1 // pred_check_branch
      %45 = sbr.rel (0) target = $region17
    $region16: #{tpu_custom_call.1} parent=1 // pred_region
      _
    $region17: #{tpu_custom_call.1} parent=1 // pred_fallthru
      _
    // Predicated region
    $region18: #{tpu_custom_call.1} parent=1 // pred_check
      _
    $region19: #{tpu_custom_call.1} parent=1 // pred_check_branch
      %47 = sbr.rel (0) target = $region21
    $region20: #{tpu_custom_call.1} parent=1 // pred_region
      %48 = dma.done [#allocation3], 64
    $region21: #{tpu_custom_call.1} parent=1 // pred_fallthru
      _
    // Predicated region
    $region22: #{tpu_custom_call.1} parent=1 // pred_check
      _
    $region23: #{tpu_custom_call.1} parent=1 // pred_check_branch
      %50 = sbr.rel (0) target = $region25
    $region24: #{tpu_custom_call.1} parent=1 // pred_region
      %51 = dma.done [#allocation6], 128
    $region25: #{tpu_custom_call.1} parent=1 // pred_fallthru
      _
    // Predicated region
    $region26: #{tpu_custom_call.1} parent=1 // pred_check
      _
    $region27: #{tpu_custom_call.1} parent=1 // pred_check_branch
      %53 = sbr.rel (0) target = $region29
    $region28: #{tpu_custom_call.1} parent=1 // pred_region
      %54 = dma.done [#allocation6], 128
    $region29: #{tpu_custom_call.1} parent=1 // pred_fallthru
      _
    %v56 = vld [vmem:[#allocation2] sm:$0xf]
    %v57 = vld [vmem:[#allocation5] sm:$0xf]
    %v58 = vld [vmem:[#allocation5 + $0x4] sm:$0xf]
    %v61 = vunpack.c.l.b16 %v57
    %v62 = vunpack.c.l.b16 %v58
    %v63 = vpack.c.b16 %v62, %v61
    %vm65 = vcmask 130048
    %v67 = vsel %vm65, %v56, 0
    %69 = vmatprep.subr.bf16.mxu0 0
    %70 = vmatpush1.bf16.msra.mxu0 %v63
    %71 = vmatprep.subr.bf16.mxu0 0
    %72 = vmatpush1.bf16.msra.mxu0 0
    %73 = vmatprep.subr.bf16.mxu0 0
    %74 = vmatpush1.bf16.msra.mxu0 0
    %75 = vmatprep.subr.bf16.mxu0 0
    %76 = vmatpush1.bf16.msra.mxu0 0
    %77 = vmatprep.subr.bf16.mxu0 0
    %78 = vmatpush1.bf16.msra.mxu0 0
    %79 = vmatprep.subr.bf16.mxu0 0
    %80 = vmatpush1.bf16.msra.mxu0 0
    %81 = vmatprep.subr.bf16.mxu0 0
    %82 = vmatpush1.bf16.msra.mxu0 0
    %83 = vmatprep.subr.bf16.mxu0 0
    %84 = vmatpush1.bf16.msra.mxu0 0
    %85 = vmatprep.subr.bf16.mxu0 0
    %86 = vmatpush1.bf16.msra.mxu0 0
    %87 = vmatprep.subr.bf16.mxu0 0
    %88 = vmatpush1.bf16.msra.mxu0 0
    %89 = vmatprep.subr.bf16.mxu0 0
    %90 = vmatpush1.bf16.msra.mxu0 0
    %91 = vmatprep.subr.bf16.mxu0 0
    %92 = vmatpush1.bf16.msra.mxu0 0
    %93 = vmatprep.subr.bf16.mxu0 0
    %94 = vmatpush1.bf16.msra.mxu0 0
    %95 = vmatprep.subr.bf16.mxu0 0
    %96 = vmatpush1.bf16.msra.mxu0 0
    %97 = vmatprep.subr.bf16.mxu0 0
    %98 = vmatpush1.bf16.msra.mxu0 0
    %99 = vmatprep.subr.bf16.mxu0 0
    %100 = vmatpush1.bf16.msra.mxu0 0
    %101 = vmatprep.mubr.bf16.mxu0 0
    %102 = vmatmul.mubr.bf16.gmra.mrb[0].mxu0 %v67
    %v103 = vpop.f32.mrb[0].mxu0
    %v104 = vadd.f32 0.0, %v103
    %v105 = vpop.f32.mrb[0].mxu0
    %v106 = vpop.f32.mrb[0].mxu0
    %v107 = vpop.f32.mrb[0].mxu0
    %108 = vdwg.mxu0
    %v109 = vpack.c.bf16 %v104, %v104
    %v110 = vld [vmem:[#allocation7] sm:$0xf]
    %v111 = vld [vmem:[#allocation7 + $0x4] sm:$0xf]
    %112 = vmatprep.subr.mxu0 0.0
    %113 = vmatpush1.xpose.msra.mxu0 %v110
    %114 = vmatprep.subr.mxu0 0.0
    %115 = vmatpush1.xpose.msra.mxu0 0.0
    %116 = vmatprep.subr.mxu0 0.0
    %117 = vmatpush1.xpose.msra.mxu0 0.0
    %118 = vmatprep.subr.mxu0 0.0
    %119 = vmatpush1.xpose.msra.mxu0 0.0
    %120 = vmatprep.subr.mxu0 0.0
    %121 = vmatpush1.xpose.msra.mxu0 0.0
    %122 = vmatprep.subr.mxu0 0.0
    %123 = vmatpush1.xpose.msra.mxu0 0.0
    %124 = vmatprep.subr.mxu0 0.0
    %125 = vmatpush1.xpose.msra.mxu0 0.0
    %126 = vmatprep.subr.mxu0 0.0
    %127 = vmatpush1.xpose.msra.mxu0 0.0
    %128 = vmatprep.subr.mxu0 0.0
    %129 = vmatpush1.xpose.msra.mxu0 0.0
    %130 = vmatprep.subr.mxu0 0.0
    %131 = vmatpush1.xpose.msra.mxu0 0.0
    %132 = vmatprep.subr.mxu0 0.0
    %133 = vmatpush1.xpose.msra.mxu0 0.0
    %134 = vmatprep.subr.mxu0 0.0
    %135 = vmatpush1.xpose.msra.mxu0 0.0
    %136 = vmatprep.subr.mxu0 0.0
    %137 = vmatpush1.xpose.msra.mxu0 0.0
    %138 = vmatprep.subr.mxu0 0.0
    %139 = vmatpush1.xpose.msra.mxu0 0.0
    %140 = vmatprep.subr.mxu0 0.0
    %141 = vmatpush1.xpose.msra.mxu0 0.0
    %142 = vmatprep.subr.mxu0 0.0
    %143 = vmatpush1.xpose.msra.mxu0 0.0
    %144 = vmatprep.subr.mxu0 0.0
    %145 = vmatpush1.xpose.msra.mxu0 0.0
    %146 = vmatprep.subr.mxu0 0.0
    %147 = vmatpush1.xpose.msra.mxu0 0.0
    %148 = vmatprep.subr.mxu0 0.0
    %149 = vmatpush1.xpose.msra.mxu0 0.0
    %150 = vmatprep.subr.mxu0 0.0
    %151 = vmatpush1.xpose.msra.mxu0 0.0
    %152 = vmatprep.subr.mxu0 0.0
    %153 = vmatpush1.xpose.msra.mxu0 0.0
    %154 = vmatprep.subr.mxu0 0.0
    %155 = vmatpush1.xpose.msra.mxu0 0.0
    %156 = vmatprep.subr.mxu0 0.0
    %157 = vmatpush1.xpose.msra.mxu0 0.0
    %158 = vmatprep.subr.mxu0 0.0
    %159 = vmatpush1.xpose.msra.mxu0 0.0
    %160 = vmatprep.subr.mxu0 0.0
    %161 = vmatpush1.xpose.msra.mxu0 0.0
    %162 = vmatprep.subr.mxu0 0.0
    %163 = vmatpush1.xpose.msra.mxu0 0.0
    %164 = vmatprep.subr.mxu0 0.0
    %165 = vmatpush1.xpose.msra.mxu0 0.0
    %166 = vmatprep.subr.mxu0 0.0
    %167 = vmatpush1.xpose.msra.mxu0 0.0
    %168 = vmatprep.subr.mxu0 0.0
    %169 = vmatpush1.xpose.msra.mxu0 0.0
    %170 = vmatprep.subr.mxu0 0.0
    %171 = vmatpush1.xpose.msra.mxu0 0.0
    %172 = vmatprep.subr.mxu0 0.0
    %173 = vmatpush1.xpose.msra.mxu0 0.0
    %174 = vmatprep.subr.mxu0 0.0
    %175 = vmatpush1.xpose.msra.mxu0 0.0
    %176 = vmatprep.mubr.f32.mxu0 0.0
    %177 = vmatmul.mubr.f32.gmra.mrb[0].mxu0 %v104
    %v178 = vpop.f32.mrb[0].mxu0
    %v179 = vadd.f32 0.0, %v178
    %v180 = vpop.f32.mrb[0].mxu0
    %181 = vdwg.mxu0
    %182 = vmatprep.subr.mxu0 0.0
    %183 = vmatpush1.xpose.msra.mxu0 %v104
    %184 = vmatprep.subr.mxu0 0.0
    %185 = vmatpush1.xpose.msra.mxu0 0.0
    %186 = vmatprep.subr.mxu0 0.0
    %187 = vmatpush1.xpose.msra.mxu0 0.0
    %188 = vmatprep.subr.mxu0 0.0
    %189 = vmatpush1.xpose.msra.mxu0 0.0
    %190 = vmatprep.subr.mxu0 0.0
    %191 = vmatpush1.xpose.msra.mxu0 0.0
    %192 = vmatprep.subr.mxu0 0.0
    %193 = vmatpush1.xpose.msra.mxu0 0.0
    %194 = vmatprep.subr.mxu0 0.0
    %195 = vmatpush1.xpose.msra.mxu0 0.0
    %196 = vmatprep.subr.mxu0 0.0
    %197 = vmatpush1.xpose.msra.mxu0 0.0
    %198 = vmatprep.subr.mxu0 0.0
    %199 = vmatpush1.xpose.msra.mxu0 0.0
    %200 = vmatprep.subr.mxu0 0.0
    %201 = vmatpush1.xpose.msra.mxu0 0.0
    %202 = vmatprep.subr.mxu0 0.0
    %203 = vmatpush1.xpose.msra.mxu0 0.0
    %204 = vmatprep.subr.mxu0 0.0
    %205 = vmatpush1.xpose.msra.mxu0 0.0
    %206 = vmatprep.subr.mxu0 0.0
    %207 = vmatpush1.xpose.msra.mxu0 0.0
    %208 = vmatprep.subr.mxu0 0.0
    %209 = vmatpush1.xpose.msra.mxu0 0.0
    %210 = vmatprep.subr.mxu0 0.0
    %211 = vmatpush1.xpose.msra.mxu0 0.0
    %212 = vmatprep.subr.mxu0 0.0
    %213 = vmatpush1.xpose.msra.mxu0 0.0
    %214 = vmatprep.subr.mxu0 0.0
    %215 = vmatpush1.xpose.msra.mxu0 0.0
    %216 = vmatprep.subr.mxu0 0.0
    %217 = vmatpush1.xpose.msra.mxu0 0.0
    %218 = vmatprep.subr.mxu0 0.0
    %219 = vmatpush1.xpose.msra.mxu0 0.0
    %220 = vmatprep.subr.mxu0 0.0
    %221 = vmatpush1.xpose.msra.mxu0 0.0
    %222 = vmatprep.subr.mxu0 0.0
    %223 = vmatpush1.xpose.msra.mxu0 0.0
    %224 = vmatprep.subr.mxu0 0.0
    %225 = vmatpush1.xpose.msra.mxu0 0.0
    %226 = vmatprep.subr.mxu0 0.0
    %227 = vmatpush1.xpose.msra.mxu0 0.0
    %228 = vmatprep.subr.mxu0 0.0
    %229 = vmatpush1.xpose.msra.mxu0 0.0
    %230 = vmatprep.subr.mxu0 0.0
    %231 = vmatpush1.xpose.msra.mxu0 0.0
    %232 = vmatprep.subr.mxu0 0.0
    %233 = vmatpush1.xpose.msra.mxu0 0.0
    %234 = vmatprep.subr.mxu0 0.0
    %235 = vmatpush1.xpose.msra.mxu0 0.0
    %236 = vmatprep.subr.mxu0 0.0
    %237 = vmatpush1.xpose.msra.mxu0 0.0
    %238 = vmatprep.subr.mxu0 0.0
    %239 = vmatpush1.xpose.msra.mxu0 0.0
    %240 = vmatprep.subr.mxu0 0.0
    %241 = vmatpush1.xpose.msra.mxu0 0.0
    %242 = vmatprep.subr.mxu0 0.0
    %243 = vmatpush1.xpose.msra.mxu0 0.0
    %244 = vmatprep.subr.mxu0 0.0
    %245 = vmatpush1.xpose.msra.mxu0 0.0
    %246 = vmatprep.mubr.f32.mxu0 0.0
    %247 = vmatmul.mubr.f32.gmra.mrb[0].mxu0 %v111
    %v248 = vpop.f32.mrb[0].mxu0
    %v249 = vadd.f32 0.0, %v248
    %v250 = vpop.f32.mrb[0].mxu0
    %251 = vdwg.mxu0
    %v252 = vld [vmem:[%s3] sm:$0x3]
    %v253 = vunpack.c.0.s8 %v252
    %v254 = vcvt.s32.f32 %v253
    %vm255 = vcmp.gt.f32.partialorder %v254, 0.0
    %v256 = vsel %vm255, 0.0, -9e+15
    %258 = vset.pattern.permute.xlu0 0
    %259 = vperm.xlu0 %258, %v179
    %v260 = vpop.permute.xlu0 %259
    %v262 = vlaneseq
    %v263 = vshrl.u32 %v262, 7
    %v264 = vsub.s32 0, %v263
    %v265 = vrot.slane %v249, %v264
    %v266 = vadd.f32 %v260, %v265
    %v267 = vmul.f32 %v266, 0.2
    %v268 = vmax.f32 %v266, %v267
    %v269 = vadd.f32 %v268, %v256
    %vm270 = vcmask 64512
    %v271 = vsel %vm270, %v269, -inf
    %272 = vmax.xlane.f32.xlu0 %v271
    %v273 = vpop.xlane.xlu0 %272
    %v274 = vsub.f32 %v269, %v273
    %v275 = vmul.f32 %v274, 1.442695
    %v276 = vpow.pop %v275
    %v277 = vsel %vm270, %v276, 0.0
    %278 = vadd.xlane.f32.xlu0 %v277
    %v279 = vpop.xlane.xlu0 %278
    %v280 = vrcp.pop %v279
    %v281 = vmul.f32 %v276, %v280
    %v282 = vpack.c.bf16 %v281, %v281
    %v284 = vsel %vm270, %v282, 0
    %vm286 = vcmask 1043456
    %v288 = vsel %vm286, %v109, 0
    %290 = vmatprep.subr.bf16.mxu0 0
    %291 = vmatpush1.bf16.msra.mxu0 %v288
    %292 = vmatprep.subr.bf16.mxu0 0
    %293 = vmatpush1.bf16.msra.mxu0 0
    %294 = vmatprep.subr.bf16.mxu0 0
    %295 = vmatpush1.bf16.msra.mxu0 0
    %296 = vmatprep.subr.bf16.mxu0 0
    %297 = vmatpush1.bf16.msra.mxu0 0
    %298 = vmatprep.subr.bf16.mxu0 0
    %299 = vmatpush1.bf16.msra.mxu0 0
    %300 = vmatprep.subr.bf16.mxu0 0
    %301 = vmatpush1.bf16.msra.mxu0 0
    %302 = vmatprep.subr.bf16.mxu0 0
    %303 = vmatpush1.bf16.msra.mxu0 0
    %304 = vmatprep.subr.bf16.mxu0 0
    %305 = vmatpush1.bf16.msra.mxu0 0
    %306 = vmatprep.subr.bf16.mxu0 0
    %307 = vmatpush1.bf16.msra.mxu0 0
    %308 = vmatprep.subr.bf16.mxu0 0
    %309 = vmatpush1.bf16.msra.mxu0 0
    %310 = vmatprep.subr.bf16.mxu0 0
    %311 = vmatpush1.bf16.msra.mxu0 0
    %312 = vmatprep.subr.bf16.mxu0 0
    %313 = vmatpush1.bf16.msra.mxu0 0
    %314 = vmatprep.subr.bf16.mxu0 0
    %315 = vmatpush1.bf16.msra.mxu0 0
    %316 = vmatprep.subr.bf16.mxu0 0
    %317 = vmatpush1.bf16.msra.mxu0 0
    %318 = vmatprep.subr.bf16.mxu0 0
    %319 = vmatpush1.bf16.msra.mxu0 0
    %320 = vmatprep.subr.bf16.mxu0 0
    %321 = vmatpush1.bf16.msra.mxu0 0
    %322 = vmatprep.mubr.bf16.mxu0 0
    %323 = vmatmul.mubr.bf16.gmra.mrb[0].mxu0 %v284
    %v324 = vpop.f32.mrb[0].mxu0
    %v325 = vadd.f32 0.0, %v324
    %v326 = vpop.f32.mrb[0].mxu0
    %v327 = vpop.f32.mrb[0].mxu0
    %v328 = vpop.f32.mrb[0].mxu0
    %329 = vdwg.mxu0
    %330 = vset.pattern.permute.xlu0 1
    %331 = vperm.xlu0 %330, %v179
    %v332 = vpop.permute.xlu0 %331
    %v334 = vlaneseq
    %v335 = vshrl.u32 %v334, 7
    %v336 = vsub.s32 1, %v335
    %v337 = vrot.slane %v249, %v336
    %v338 = vadd.f32 %v332, %v337
    %v339 = vmul.f32 %v338, 0.2
    %v340 = vmax.f32 %v338, %v339
    %v341 = vadd.f32 %v340, %v256
    %v342 = vsel %vm270, %v341, -inf
    %343 = vmax.xlane.f32.xlu0 %v342
    %v344 = vpop.xlane.xlu0 %343
    %v345 = vsub.f32 %v341, %v344
    %v346 = vmul.f32 %v345, 1.442695
    %v347 = vpow.pop %v346
    %v348 = vsel %vm270, %v347, 0.0
    %349 = vadd.xlane.f32.xlu0 %v348
    %v350 = vpop.xlane.xlu0 %349
    %v351 = vrcp.pop %v350
    %v352 = vmul.f32 %v347, %v351
    %v353 = vpack.c.bf16 %v352, %v352
    %355 = vrot.lane.b32.xlu0 %v109, 96
    %v356 = vpop.permute.xlu0 %355
    %v358 = vsel %vm270, %v353, 0
    %v361 = vsel %vm286, %v356, 0
    %363 = vmatprep.subr.bf16.mxu0 0
    %364 = vmatpush1.bf16.msra.mxu0 %v361
    %365 = vmatprep.subr.bf16.mxu0 0
    %366 = vmatpush1.bf16.msra.mxu0 0
    %367 = vmatprep.subr.bf16.mxu0 0
    %368 = vmatpush1.bf16.msra.mxu0 0
    %369 = vmatprep.subr.bf16.mxu0 0
    %370 = vmatpush1.bf16.msra.mxu0 0
    %371 = vmatprep.subr.bf16.mxu0 0
    %372 = vmatpush1.bf16.msra.mxu0 0
    %373 = vmatprep.subr.bf16.mxu0 0
    %374 = vmatpush1.bf16.msra.mxu0 0
    %375 = vmatprep.subr.bf16.mxu0 0
    %376 = vmatpush1.bf16.msra.mxu0 0
    %377 = vmatprep.subr.bf16.mxu0 0
    %378 = vmatpush1.bf16.msra.mxu0 0
    %379 = vmatprep.subr.bf16.mxu0 0
    %380 = vmatpush1.bf16.msra.mxu0 0
    %381 = vmatprep.subr.bf16.mxu0 0
    %382 = vmatpush1.bf16.msra.mxu0 0
    %383 = vmatprep.subr.bf16.mxu0 0
    %384 = vmatpush1.bf16.msra.mxu0 0
    %385 = vmatprep.subr.bf16.mxu0 0
    %386 = vmatpush1.bf16.msra.mxu0 0
    %387 = vmatprep.subr.bf16.mxu0 0
    %388 = vmatpush1.bf16.msra.mxu0 0
    %389 = vmatprep.subr.bf16.mxu0 0
    %390 = vmatpush1.bf16.msra.mxu0 0
    %391 = vmatprep.subr.bf16.mxu0 0
    %392 = vmatpush1.bf16.msra.mxu0 0
    %393 = vmatprep.subr.bf16.mxu0 0
    %394 = vmatpush1.bf16.msra.mxu0 0
    %395 = vmatprep.mubr.bf16.mxu0 0
    %396 = vmatmul.mubr.bf16.gmra.mrb[0].mxu0 %v358
    %v397 = vpop.f32.mrb[0].mxu0
    %v398 = vadd.f32 0.0, %v397
    %v399 = vpop.f32.mrb[0].mxu0
    %v400 = vpop.f32.mrb[0].mxu0
    %v401 = vpop.f32.mrb[0].mxu0
    %402 = vdwg.mxu0
    %403 = vset.pattern.permute.xlu0 2
    %404 = vperm.xlu0 %403, %v179
    %v405 = vpop.permute.xlu0 %404
    %v407 = vlaneseq
    %v408 = vshrl.u32 %v407, 7
    %v409 = vsub.s32 2, %v408
    %v410 = vrot.slane %v249, %v409
    %v411 = vadd.f32 %v405, %v410
    %v412 = vmul.f32 %v411, 0.2
    %v413 = vmax.f32 %v411, %v412
    %v414 = vadd.f32 %v413, %v256
    %v415 = vsel %vm270, %v414, -inf
    %416 = vmax.xlane.f32.xlu0 %v415
    %v417 = vpop.xlane.xlu0 %416
    %v418 = vsub.f32 %v414, %v417
    %v419 = vmul.f32 %v418, 1.442695
    %v420 = vpow.pop %v419
    %v421 = vsel %vm270, %v420, 0.0
    %422 = vadd.xlane.f32.xlu0 %v421
    %v423 = vpop.xlane.xlu0 %422
    %v424 = vrcp.pop %v423
    %v425 = vmul.f32 %v420, %v424
    %v426 = vpack.c.bf16 %v425, %v425
    %427 = vrot.lane.b32.xlu0 %v109, 64
    %v428 = vpop.permute.xlu0 %427
    %v430 = vsel %vm270, %v426, 0
    %v433 = vsel %vm286, %v428, 0
    %435 = vmatprep.subr.bf16.mxu0 0
    %436 = vmatpush1.bf16.msra.mxu0 %v433
    %437 = vmatprep.subr.bf16.mxu0 0
    %438 = vmatpush1.bf16.msra.mxu0 0
    %439 = vmatprep.subr.bf16.mxu0 0
    %440 = vmatpush1.bf16.msra.mxu0 0
    %441 = vmatprep.subr.bf16.mxu0 0
    %442 = vmatpush1.bf16.msra.mxu0 0
    %443 = vmatprep.subr.bf16.mxu0 0
    %444 = vmatpush1.bf16.msra.mxu0 0
    %445 = vmatprep.subr.bf16.mxu0 0
    %446 = vmatpush1.bf16.msra.mxu0 0
    %447 = vmatprep.subr.bf16.mxu0 0
    %448 = vmatpush1.bf16.msra.mxu0 0
    %449 = vmatprep.subr.bf16.mxu0 0
    %450 = vmatpush1.bf16.msra.mxu0 0
    %451 = vmatprep.subr.bf16.mxu0 0
    %452 = vmatpush1.bf16.msra.mxu0 0
    %453 = vmatprep.subr.bf16.mxu0 0
    %454 = vmatpush1.bf16.msra.mxu0 0
    %455 = vmatprep.subr.bf16.mxu0 0
    %456 = vmatpush1.bf16.msra.mxu0 0
    %457 = vmatprep.subr.bf16.mxu0 0
    %458 = vmatpush1.bf16.msra.mxu0 0
    %459 = vmatprep.subr.bf16.mxu0 0
    %460 = vmatpush1.bf16.msra.mxu0 0
    %461 = vmatprep.subr.bf16.mxu0 0
    %462 = vmatpush1.bf16.msra.mxu0 0
    %463 = vmatprep.subr.bf16.mxu0 0
    %464 = vmatpush1.bf16.msra.mxu0 0
    %465 = vmatprep.subr.bf16.mxu0 0
    %466 = vmatpush1.bf16.msra.mxu0 0
    %467 = vmatprep.mubr.bf16.mxu0 0
    %468 = vmatmul.mubr.bf16.gmra.mrb[0].mxu0 %v430
    %v469 = vpop.f32.mrb[0].mxu0
    %v470 = vadd.f32 0.0, %v469
    %v471 = vpop.f32.mrb[0].mxu0
    %v472 = vpop.f32.mrb[0].mxu0
    %v473 = vpop.f32.mrb[0].mxu0
    %474 = vdwg.mxu0
    %475 = vset.pattern.permute.xlu0 3
    %476 = vperm.xlu0 %475, %v179
    %v477 = vpop.permute.xlu0 %476
    %v479 = vlaneseq
    %v480 = vshrl.u32 %v479, 7
    %v481 = vsub.s32 3, %v480
    %v482 = vrot.slane %v249, %v481
    %v483 = vadd.f32 %v477, %v482
    %v484 = vmul.f32 %v483, 0.2
    %v485 = vmax.f32 %v483, %v484
    %v486 = vadd.f32 %v485, %v256
    %v487 = vsel %vm270, %v486, -inf
    %488 = vmax.xlane.f32.xlu0 %v487
    %v489 = vpop.xlane.xlu0 %488
    %v490 = vsub.f32 %v486, %v489
    %v491 = vmul.f32 %v490, 1.442695
    %v492 = vpow.pop %v491
    %v493 = vsel %vm270, %v492, 0.0
    %494 = vadd.xlane.f32.xlu0 %v493
    %v495 = vpop.xlane.xlu0 %494
    %v496 = vrcp.pop %v495
    %v497 = vmul.f32 %v492, %v496
    %v498 = vpack.c.bf16 %v497, %v497
    %499 = vrot.lane.b32.xlu0 %v109, 32
    %v500 = vpop.permute.xlu0 %499
    %v502 = vsel %vm270, %v498, 0
    %v505 = vsel %vm286, %v500, 0
    %507 = vmatprep.subr.bf16.mxu0 0
    %508 = vmatpush1.bf16.msra.mxu0 %v505
    %509 = vmatprep.subr.bf16.mxu0 0
    %510 = vmatpush1.bf16.msra.mxu0 0
    %511 = vmatprep.subr.bf16.mxu0 0
    %512 = vmatpush1.bf16.msra.mxu0 0
    %513 = vmatprep.subr.bf16.mxu0 0
    %514 = vmatpush1.bf16.msra.mxu0 0
    %515 = vmatprep.subr.bf16.mxu0 0
    %516 = vmatpush1.bf16.msra.mxu0 0
    %517 = vmatprep.subr.bf16.mxu0 0
    %518 = vmatpush1.bf16.msra.mxu0 0
    %519 = vmatprep.subr.bf16.mxu0 0
    %520 = vmatpush1.bf16.msra.mxu0 0
    %521 = vmatprep.subr.bf16.mxu0 0
    %522 = vmatpush1.bf16.msra.mxu0 0
    %523 = vmatprep.subr.bf16.mxu0 0
    %524 = vmatpush1.bf16.msra.mxu0 0
    %525 = vmatprep.subr.bf16.mxu0 0
    %526 = vmatpush1.bf16.msra.mxu0 0
    %527 = vmatprep.subr.bf16.mxu0 0
    %528 = vmatpush1.bf16.msra.mxu0 0
    %529 = vmatprep.subr.bf16.mxu0 0
    %530 = vmatpush1.bf16.msra.mxu0 0
    %531 = vmatprep.subr.bf16.mxu0 0
    %532 = vmatpush1.bf16.msra.mxu0 0
    %533 = vmatprep.subr.bf16.mxu0 0
    %534 = vmatpush1.bf16.msra.mxu0 0
    %535 = vmatprep.subr.bf16.mxu0 0
    %536 = vmatpush1.bf16.msra.mxu0 0
    %537 = vmatprep.subr.bf16.mxu0 0
    %538 = vmatpush1.bf16.msra.mxu0 0
    %539 = vmatprep.mubr.bf16.mxu0 0
    %540 = vmatmul.mubr.bf16.gmra.mrb[0].mxu0 %v502
    %v541 = vpop.f32.mrb[0].mxu0
    %v542 = vadd.f32 0.0, %v541
    %v543 = vpop.f32.mrb[0].mxu0
    %v544 = vpop.f32.mrb[0].mxu0
    %v545 = vpop.f32.mrb[0].mxu0
    %546 = vdwg.mxu0
    %548 = vrot.lane.b32.xlu0 %v398, 32
    %v549 = vpop.permute.xlu0 %548
    %552 = vrot.lane.b32.xlu0 %v470, 64
    %v553 = vpop.permute.xlu0 %552
    %556 = vrot.lane.b32.xlu0 %v542, 96
    %v557 = vpop.permute.xlu0 %556
    %vm559 = vcmask 261120
    %v560 = vsel %vm559, %v325, %v549
    %vm561 = vcmask 523264
    %v562 = vsel %vm561, %v560, %v553
    %vm563 = vcmask 785408
    %v564 = vsel %vm563, %v562, %v557
    %vm565 = vcmp.gt.f32.partialorder %v564, 0.0
    %v566 = vmul.f32 %v564, 1.442695
    %v567 = vpow.pop %v566
    %v568 = vsub.f32 %v567, 1.0
    %v569 = vsel %vm565, %v564, %v568
    %570 = vst [vmem:[#allocation8] sm:$0xff] %v569
    // Predicated region
    $region30: #{tpu_custom_call.1} parent=1 // pred_check
      _
    $region31: #{tpu_custom_call.1} parent=1 // pred_check_branch
      %572 = sbr.rel (0) target = $region33
    $region32: #{tpu_custom_call.1} parent=1 // pred_region
      %s574 = ssub.s32 128, 128
      %575 = vsyncadd [#allocation4], %s574
      %s577 = sshll.u32 [#allocation8], 4
      %s578 = int_to_ptr.vmem [resolvable:$true] %s577
      %580 = dma.vmem_to_hbm [thread:$0]  %s578, 128, %s4, [#allocation4]
    $region33: #{tpu_custom_call.1} parent=1 // pred_fallthru
      _
    // Predicated region
    $region34: #{tpu_custom_call.1} parent=1 // pred_check
      _
    $region35: #{tpu_custom_call.1} parent=1 // pred_check_branch
      %582 = sbr.rel (0) target = $region37
    $region36: #{tpu_custom_call.1} parent=1 // pred_region
      %583 = dma.done [#allocation4], 128
    $region37: #{tpu_custom_call.1} parent=1 // pred_fallthru
      _
    %584 = vsyncpa [#allocation3], 1
    %585 = vsyncpa [#allocation6], 1
    %586 = vsyncpa [#allocation4], 1

</llo_original>
